<compile_context>
chip_gen: v5e
topology: v5e:2x2
jax: 0.10.0
libtpu: 0.0.40
codegen_flags: <defaults>
</compile_context>

<pallas_src>
import functools

import jax
import jax.numpy as jnp
from jax.experimental import pallas as pl
from jax.experimental.pallas import tpu as pltpu


def se_block_kernel(x_ref, w1_ref, b1_ref, w2_ref, b2_ref, o_ref, *,
                    inv_hw, pool_chunk=1024):
    # x_ref/o_ref: (TB, C, HW) block. w1: (C, C//4), b1: (1, C//4),
    # w2: (C//4, C), b2: (1, C).  Rows (batch) are fully independent, so any
    # padding rows in a partial last block stay confined to masked-out rows.
    tb, c, hw = x_ref.shape
    x = x_ref[...]                                            # input dtype

    # Squeeze: global average pool over the lane (HW) axis, f32 accumulation.
    if x_ref.dtype == jnp.float32:
        pooled = jnp.sum(x, axis=-1) * inv_hw                 # (TB, C), no copy
    else:
        # Chunked reduction: avoid materializing a full f32 copy of the slab.
        acc = jnp.zeros((tb, c), jnp.float32)
        for start in range(0, hw, pool_chunk):
            stop = min(start + pool_chunk, hw)
            acc = acc + jnp.sum(
                x_ref[:, :, start:stop].astype(jnp.float32), axis=-1)
        pooled = acc * inv_hw                                  # (TB, C)

    # Excitation: Linear -> ReLU -> Linear (weights stored as (in, out)).
    h = jnp.dot(pooled, w1_ref[...],
                preferred_element_type=jnp.float32) + b1_ref[...]   # (TB, C//4)
    h = jnp.maximum(h, 0.0)
    s = jnp.dot(h, w2_ref[...],
                preferred_element_type=jnp.float32) + b2_ref[...]   # (TB, C)

    # Gate: sigmoid, then scale the input (multiply in input dtype).
    gate = jax.nn.sigmoid(s).astype(x.dtype)                   # (TB, C)
    o_ref[...] = (x * gate[:, :, None]).astype(o_ref.dtype)


def _tpu_vmem_capacity_bytes():
    try:
        return int(pltpu.get_tpu_info().vmem_capacity_bytes)
    except Exception:
        return 128 << 20  # conservative default (v5e/v6e class)


def se_block(x_nchw, w1, b1, w2, b2):
    """x_nchw: (B, C, H, W); weights in (in, out) layout; biases as (1, out)."""
    B, C, H, W = x_nchw.shape
    HW = H * W
    itemsize = jnp.dtype(x_nchw.dtype).itemsize
    x_flat = x_nchw.reshape(B, C, HW)        # no padding: tail stores are masked

    weight_bytes = sum(int(a.size) * jnp.dtype(a.dtype).itemsize
                       for a in (w1, b1, w2, b2))

    # Generation-aware VMEM budgets.
    vmem_cap = _tpu_vmem_capacity_bytes()
    if vmem_cap <= (64 << 20):               # v7x-class: 64 MiB physical VMEM
        block_budget = 10 << 20
        vmem_ceiling = 48 << 20
    else:                                    # v5e/v6e: 128 MiB physical VMEM
        block_budget = 24 << 20
        vmem_ceiling = 100 << 20

    per_batch_bytes = C * HW * itemsize
    headroom = 8 << 20

    # Single-pass path needs one batch element's in+out slabs (double-buffered)
    # plus weights to fit under the scoped-VMEM ceiling.
    assert 4 * per_batch_bytes + 2 * weight_bytes + headroom <= vmem_ceiling, (
        "per-batch (C, HW) slab too large for single-pass SE kernel on this "
        "TPU generation; a two-pass pool/scale kernel tiled over HW is needed")

    # Batch TB examples per grid step: MiB-scale DMAs, but keep >= 2 grid steps
    # when B >= 2 so both v7x TensorCores get work along the parallel axis.
    tb = max(1, min(B, block_budget // max(per_batch_bytes, 1)))
    if B >= 2:
        tb = min(tb, pl.cdiv(B, 2))
    grid = (pl.cdiv(B, tb),)

    block_bytes = tb * per_batch_bytes
    vmem_needed = 4 * block_bytes + 2 * weight_bytes + headroom
    vmem_limit = int(min(vmem_needed, vmem_ceiling))

    # Invariant weights: single-buffer when big enough to matter (else default).
    def weight_spec(arr):
        if weight_bytes > (1 << 20):
            return pl.BlockSpec(arr.shape, lambda b: (0, 0),
                                pipeline_mode=pl.Buffered(1))
        return pl.BlockSpec(arr.shape, lambda b: (0, 0))

    cost = pl.CostEstimate(
        flops=B * (4 * C * max(C // 4, 1) + 2 * C * HW),
        transcendentals=B * C,                       # sigmoid
        bytes_accessed=2 * B * C * HW * itemsize + weight_bytes,
    )

    kernel = functools.partial(se_block_kernel, inv_hw=float(1.0 / HW))

    out_flat = pl.pallas_call(
        kernel,
        out_shape=jax.ShapeDtypeStruct((B, C, HW), x_nchw.dtype),
        grid=grid,
        in_specs=[
            # TB batch elements per step -> double-buffered activation DMA.
            pl.BlockSpec((tb, C, HW), lambda b: (b, 0, 0)),
            weight_spec(w1), weight_spec(b1), weight_spec(w2), weight_spec(b2),
        ],
        out_specs=pl.BlockSpec((tb, C, HW), lambda b: (b, 0, 0)),
        compiler_params=pltpu.CompilerParams(
            dimension_semantics=("parallel",),       # megacore split over batch
            vmem_limit_bytes=vmem_limit,
        ),
        cost_estimate=cost,
    )(x_flat, w1, b1, w2, b2)

    return out_flat.reshape(B, C, H, W)


def init_params(key, exp_size, divide=4, dtype=jnp.float32):
    """Deterministic synthetic params. PyTorch Linear weight is (out, in);
    we store the transpose (in, out) so the kernel does y = x @ W + b."""
    hidden = exp_size // divide
    k1, k2, k3, k4 = jax.random.split(key, 4)
    w1 = jax.random.normal(k1, (exp_size, hidden), dtype) * 0.1
    b1 = jax.random.normal(k2, (1, hidden), dtype) * 0.1
    w2 = jax.random.normal(k3, (hidden, exp_size), dtype) * 0.1
    b2 = jax.random.normal(k4, (1, exp_size), dtype) * 0.1
    return w1, b1, w2, b2


def reference(x, w1, b1, w2, b2):
    """Plain-JAX reference of the same math (PyTorch SE_Block forward)."""
    pooled = jnp.mean(x, axis=(2, 3))
    h = jnp.maximum(
        jnp.dot(pooled, w1, precision=jax.lax.Precision.HIGHEST) + b1, 0.0)
    s = jnp.dot(h, w2, precision=jax.lax.Precision.HIGHEST) + b2
    gate = jax.nn.sigmoid(s)
    return gate[:, :, None, None] * x


if __name__ == "__main__":
    key = jax.random.PRNGKey(0)
    kx1, kp1, kx2, kp2 = jax.random.split(key, 4)

    # Case 1: lane-aligned spatial (HW = 256), exp_size = 32, divide = 4.
    B, C, H, W = 2, 32, 16, 16
    x1 = jax.random.normal(kx1, (B, C, H, W), jnp.float32)
    p1 = init_params(kp1, exp_size=C, divide=4)
    out1 = se_block(x1, *p1)
    jax.block_until_ready(out1)
    assert jnp.allclose(out1, reference(x1, *p1), atol=1e-3, rtol=1e-3)

    # Case 2: unaligned spatial (HW = 49) + partial last batch block
    # (exercises the no-pad masked-tail-store path and uneven grid).
    B2, C2, H2, W2 = 3, 16, 7, 7
    x2 = jax.random.normal(kx2, (B2, C2, H2, W2), jnp.float32)
    p2 = init_params(kp2, exp_size=C2, divide=4)
    out2 = se_block(x2, *p2)
    jax.block_until_ready(out2)
    assert jnp.allclose(out2, reference(x2, *p2), atol=1e-3, rtol=1e-3)

    print("KERNEL_OK")
</pallas_src>

<mosaic_0001>
module attributes {stable_mosaic.version = 11 : i64} {
  func.func @se_block_kernel(%arg0: i32, %arg1: memref<1x32x256xf32, #tpu.memory_space<vmem>>, %arg2: memref<32x8xf32, #tpu.memory_space<vmem>>, %arg3: memref<1x8xf32, #tpu.memory_space<vmem>>, %arg4: memref<8x32xf32, #tpu.memory_space<vmem>>, %arg5: memref<1x32xf32, #tpu.memory_space<vmem>>, %arg6: memref<1x32x256xf32, #tpu.memory_space<vmem>>) attributes {dimension_semantics = [#tpu.dimension_semantics<parallel>], iteration_bounds = array<i64: 2>, scalar_prefetch = 0 : i64, scratch_operands = 0 : i64, tpu.core_type = #tpu.core_type<tc>, window_params = [{transform_indices = @transform_0, window_bounds = array<i64: 1, 32, 256>}, {pipeline_mode = #tpu.pipeline_mode<synchronous>, transform_indices = @transform_1, window_bounds = array<i64: 32, 8>}, {pipeline_mode = #tpu.pipeline_mode<synchronous>, transform_indices = @transform_2, window_bounds = array<i64: 1, 8>}, {pipeline_mode = #tpu.pipeline_mode<synchronous>, transform_indices = @transform_3, window_bounds = array<i64: 8, 32>}, {pipeline_mode = #tpu.pipeline_mode<synchronous>, transform_indices = @transform_4, window_bounds = array<i64: 1, 32>}, {transform_indices = @transform_5, window_bounds = array<i64: 1, 32, 256>}]} {
    %c0 = arith.constant 0 : index
    %c0_0 = arith.constant 0 : index
    %c0_1 = arith.constant 0 : index
    %0 = vector.load %arg1[%c0, %c0_0, %c0_1] : memref<1x32x256xf32, #tpu.memory_space<vmem>>, vector<1x32x256xf32>
    %cst = arith.constant dense<0.000000e+00> : vector<1x32xf32>
    %1 = vector.multi_reduction <add>, %0, %cst [2] : vector<1x32x256xf32> to vector<1x32xf32>
    %cst_2 = arith.constant 3.906250e-03 : f32
    %2 = vector.broadcast %cst_2 : f32 to vector<1x32xf32>
    %3 = arith.mulf %1, %2 : vector<1x32xf32>
    %c0_3 = arith.constant 0 : index
    %c0_4 = arith.constant 0 : index
    %4 = vector.load %arg2[%c0_3, %c0_4] : memref<32x8xf32, #tpu.memory_space<vmem>>, vector<32x8xf32>
    %cst_5 = arith.constant dense<0.000000e+00> : vector<1x8xf32>
    %5 = tpu.matmul %3, %4, %cst_5 {dimension_numbers = #tpu.dot_dimension_numbers<[1], [0], [0], [1], [0, 0, 1, 1], [], []>} : vector<1x32xf32>, vector<32x8xf32>, vector<1x8xf32> -> vector<1x8xf32>
    %c0_6 = arith.constant 0 : index
    %c0_7 = arith.constant 0 : index
    %6 = vector.load %arg3[%c0_6, %c0_7] : memref<1x8xf32, #tpu.memory_space<vmem>>, vector<1x8xf32>
    %7 = arith.addf %5, %6 : vector<1x8xf32>
    %cst_8 = arith.constant 0.000000e+00 : f32
    %8 = vector.broadcast %cst_8 : f32 to vector<1x8xf32>
    %9 = arith.maximumf %7, %8 : vector<1x8xf32>
    %c0_9 = arith.constant 0 : index
    %c0_10 = arith.constant 0 : index
    %10 = vector.load %arg4[%c0_9, %c0_10] : memref<8x32xf32, #tpu.memory_space<vmem>>, vector<8x32xf32>
    %cst_11 = arith.constant dense<0.000000e+00> : vector<1x32xf32>
    %11 = tpu.matmul %9, %10, %cst_11 {dimension_numbers = #tpu.dot_dimension_numbers<[1], [0], [0], [1], [0, 0, 1, 1], [], []>} : vector<1x8xf32>, vector<8x32xf32>, vector<1x32xf32> -> vector<1x32xf32>
    %c0_12 = arith.constant 0 : index
    %c0_13 = arith.constant 0 : index
    %12 = vector.load %arg5[%c0_12, %c0_13] : memref<1x32xf32, #tpu.memory_space<vmem>>, vector<1x32xf32>
    %13 = arith.addf %11, %12 : vector<1x32xf32>
    %14 = arith.negf %13 : vector<1x32xf32>
    %15 = math.exp %14 : vector<1x32xf32>
    %cst_14 = arith.constant 1.000000e+00 : f32
    %16 = vector.broadcast %cst_14 : f32 to vector<1x32xf32>
    %17 = arith.addf %16, %15 : vector<1x32xf32>
    %18 = arith.divf %16, %17 : vector<1x32xf32>
    %19 = vector.shape_cast %18 : vector<1x32xf32> to vector<1x32x1xf32>
    %20 = vector.broadcast %19 : vector<1x32x1xf32> to vector<1x32x256xf32>
    %21 = arith.mulf %0, %20 : vector<1x32x256xf32>
    %c0_15 = arith.constant 0 : index
    %c0_16 = arith.constant 0 : index
    %c0_17 = arith.constant 0 : index
    %22 = vector.load %arg6[%c0_15, %c0_16, %c0_17] : memref<1x32x256xf32, #tpu.memory_space<vmem>>, vector<1x32x256xf32>
    tpu.vector_store %arg6[%c0_15, %c0_16, %c0_17], %21 {strides = array<i32>} : memref<1x32x256xf32, #tpu.memory_space<vmem>>, vector<1x32x256xf32>,
    return
  }
  func.func @transform_0(%arg0: i32) -> (i32, i32, i32) {
    %c0_i32 = arith.constant 0 : i32
    %c0_i32_0 = arith.constant 0 : i32
    %c0_i32_1 = arith.constant 0 : i32
    return %arg0, %c0_i32, %c0_i32_0 : i32, i32, i32
  }
  func.func @transform_1(%arg0: i32) -> (i32, i32) {
    %c0_i32 = arith.constant 0 : i32
    %c0_i32_0 = arith.constant 0 : i32
    %c0_i32_1 = arith.constant 0 : i32
    return %c0_i32, %c0_i32_0 : i32, i32
  }
  func.func @transform_2(%arg0: i32) -> (i32, i32) {
    %c0_i32 = arith.constant 0 : i32
    %c0_i32_0 = arith.constant 0 : i32
    %c0_i32_1 = arith.constant 0 : i32
    return %c0_i32, %c0_i32_0 : i32, i32
  }
  func.func @transform_3(%arg0: i32) -> (i32, i32) {
    %c0_i32 = arith.constant 0 : i32
    %c0_i32_0 = arith.constant 0 : i32
    %c0_i32_1 = arith.constant 0 : i32
    return %c0_i32, %c0_i32_0 : i32, i32
  }
  func.func @transform_4(%arg0: i32) -> (i32, i32) {
    %c0_i32 = arith.constant 0 : i32
    %c0_i32_0 = arith.constant 0 : i32
    %c0_i32_1 = arith.constant 0 : i32
    return %c0_i32, %c0_i32_0 : i32, i32
  }
  func.func @transform_5(%arg0: i32) -> (i32, i32, i32) {
    %c0_i32 = arith.constant 0 : i32
    %c0_i32_0 = arith.constant 0 : i32
    %c0_i32_1 = arith.constant 0 : i32
    return %arg0, %c0_i32, %c0_i32_0 : i32, i32, i32
  }
}

</mosaic_0001>

<llo_original>
// kernel: tpu_custom_call.1
$region0: #{tpu_custom_call.1}
  #allocation0 [shape = 'u32[]', space=smem, size = 0x4, offset = 0x4, fixed_abs, tag = 'smem constant byte address 0x4 - core index']
  #allocation1 [shape = 'u32[72,128]{1,0:T(1,128)}', space=vmem, size = 0x9000, scoped, tag = 'internal scratch']
  %s0 = inlined_call_operand.hbm [shape: f32[2,32,256], index: 0, kind: input, shape index: {}]
  %s1 = inlined_call_operand.vmem [shape: f32[32,8], index: 1, kind: input, shape index: {}]
  %s2 = inlined_call_operand.vmem [shape: f32[1,8], index: 2, kind: input, shape index: {}]
  %s3 = inlined_call_operand.vmem [shape: f32[8,32], index: 3, kind: input, shape index: {}]
  %s4 = inlined_call_operand.vmem [shape: f32[1,32], index: 4, kind: input, shape index: {}]
  %s5 = inlined_call_operand.hbm [shape: f32[2,32,256], index: 5, kind: output, shape index: {}]
  %s6 = sld [smem:[#allocation0]]
  $region57: #{tpu_custom_call.1} parent=0
    _
  %s8 = ssub.s32 1, %s6
  %s9 = scalar_select 0, %s8, %s6
  $region1: #{tpu_custom_call.1} parent=0
    #allocation2 [shape = 'u8[65536]{0}', space=vmem, size = 0x10000, scoped, tag = 'input window, operand 0']
    #allocation3 [shape = 's32[2]{0}', space=sflag, size = 0x8, scoped, tag = 'scoped memory for tpu_custom_call.1']
    #allocation4 [shape = 's32[2]{0}', space=sflag, size = 0x8, scoped, tag = 'scoped memory for tpu_custom_call.1']
    #allocation5 [shape = 'u8[65536]{0}', space=vmem, size = 0x10000, scoped, tag = 'output window, operand 0']
    %10 = vsyncpa [#allocation3], 0
    %s11 = scalar_lea.sflag [#allocation3], 1
    %12 = vsyncpa %s11, 0
    %13 = vsyncpa [#allocation4], 0
    %s14 = scalar_lea.sflag [#allocation4], 1
    %15 = vsyncpa %s14, 0
    loop: start=0, step=1, limit=4
    $region2: #{tpu_custom_call.1} parent=1 // loop_pre_header
      _
    $region3: #{tpu_custom_call.1} parent=1 // loop_header
      %s17 = sphi 0, %s21
      %p18 = scmp.ge.s32.totalorder %s17, 4
      %s27 = sphi 0, %s29
      %s30 = sphi 0, %s27
      %s31 = sphi 0, %s30
      %s47 = sphi 0, %s31
      %s51 = sphi 0, %s51
      %s53 = sphi 0, %s51
      %s54 = sphi 0, %s53
      %s68 = sphi 0, %s54
      %s72 = sphi 0, %s72
      %s74 = sphi 0, %s72
      %s75 = sphi 0, %s74
      %s89 = sphi 0, %s75
      %s93 = sphi 0, %s93
      %s95 = sphi 0, %s93
      %s96 = sphi 0, %s95
      %s110 = sphi 0, %s96
      %s114 = sphi 0, %s114
      %s116 = sphi 0, %s114
      %s117 = sphi 0, %s116
      %s131 = sphi 0, %s117
      %s137 = sphi 0, %s139
      %s140 = sphi 0, %s137
      %s141 = sphi 0, %s140
      %s157 = sphi 0, %s141
    $region4: #{tpu_custom_call.1} parent=1 // loop_header_branch
      %20 = sbr.rel (%p18) target = $region8
    $region5: #{tpu_custom_call.1} parent=1 // loop_body
      %s22 = ssub.s32 %s17, 1
      %s23 = ssub.s32 %s17, 2
      %s24 = sadd.s32 %s17, 1
      %s25 = ssub.s32 %s17, %s24
      %p26 = scmp.eq.s32.totalorder %s25, 0
      %s28 = sadd.s32 %s27, 1
      %s29 = scalar_select %p26, %s27, %s28
      %p32 = pneg %p26
      %p33 = scmp.eq.s32.totalorder %s17, 1
      %p34 = por %p32, %p33
      %p35 = scmp.ne.s32.totalorder %s27, %s30
      %p36 = scmp.eq.s32.totalorder %s17, 0
      %p37 = por %p35, %p36
      %p38 = scmp.ne.s32.totalorder %s27, %s30
      %p39 = scmp.eq.s32.totalorder %s22, 1
      %p40 = por %p38, %p39
      %p41 = scmp.ne.s32.totalorder %s30, %s31
      %p42 = scmp.eq.s32.totalorder %s22, 0
      %p43 = por %p41, %p42
      %p44 = scmp.ne.s32.totalorder %s30, %s31
      %p45 = scmp.eq.s32.totalorder %s23, 1
      %p46 = por %p44, %p45
      %p48 = scmp.ne.s32.totalorder %s31, %s47
      %p49 = scmp.eq.s32.totalorder %s23, 0
      %p50 = por %p48, %p49
      %s52 = sadd.s32 %s51, 1
      %p55 = scmp.eq.s32.totalorder %s17, 1
      %p56 = scmp.ne.s32.totalorder %s51, %s53
      %p57 = scmp.eq.s32.totalorder %s17, 0
      %p58 = por %p56, %p57
      %p59 = scmp.ne.s32.totalorder %s51, %s53
      %p60 = scmp.eq.s32.totalorder %s22, 1
      %p61 = por %p59, %p60
      %p62 = scmp.ne.s32.totalorder %s53, %s54
      %p63 = scmp.eq.s32.totalorder %s22, 0
      %p64 = por %p62, %p63
      %p65 = scmp.ne.s32.totalorder %s53, %s54
      %p66 = scmp.eq.s32.totalorder %s23, 1
      %p67 = por %p65, %p66
      %p69 = scmp.ne.s32.totalorder %s54, %s68
      %p70 = scmp.eq.s32.totalorder %s23, 0
      %p71 = por %p69, %p70
      %s73 = sadd.s32 %s72, 1
      %p76 = scmp.eq.s32.totalorder %s17, 1
      %p77 = scmp.ne.s32.totalorder %s72, %s74
      %p78 = scmp.eq.s32.totalorder %s17, 0
      %p79 = por %p77, %p78
      %p80 = scmp.ne.s32.totalorder %s72, %s74
      %p81 = scmp.eq.s32.totalorder %s22, 1
      %p82 = por %p80, %p81
      %p83 = scmp.ne.s32.totalorder %s74, %s75
      %p84 = scmp.eq.s32.totalorder %s22, 0
      %p85 = por %p83, %p84
      %p86 = scmp.ne.s32.totalorder %s74, %s75
      %p87 = scmp.eq.s32.totalorder %s23, 1
      %p88 = por %p86, %p87
      %p90 = scmp.ne.s32.totalorder %s75, %s89
      %p91 = scmp.eq.s32.totalorder %s23, 0
      %p92 = por %p90, %p91
      %s94 = sadd.s32 %s93, 1
      %p97 = scmp.eq.s32.totalorder %s17, 1
      %p98 = scmp.ne.s32.totalorder %s93, %s95
      %p99 = scmp.eq.s32.totalorder %s17, 0
      %p100 = por %p98, %p99
      %p101 = scmp.ne.s32.totalorder %s93, %s95
      %p102 = scmp.eq.s32.totalorder %s22, 1
      %p103 = por %p101, %p102
      %p104 = scmp.ne.s32.totalorder %s95, %s96
      %p105 = scmp.eq.s32.totalorder %s22, 0
      %p106 = por %p104, %p105
      %p107 = scmp.ne.s32.totalorder %s95, %s96
      %p108 = scmp.eq.s32.totalorder %s23, 1
      %p109 = por %p107, %p108
      %p111 = scmp.ne.s32.totalorder %s96, %s110
      %p112 = scmp.eq.s32.totalorder %s23, 0
      %p113 = por %p111, %p112
      %s115 = sadd.s32 %s114, 1
      %p118 = scmp.eq.s32.totalorder %s17, 1
      %p119 = scmp.ne.s32.totalorder %s114, %s116
      %p120 = scmp.eq.s32.totalorder %s17, 0
      %p121 = por %p119, %p120
      %p122 = scmp.ne.s32.totalorder %s114, %s116
      %p123 = scmp.eq.s32.totalorder %s22, 1
      %p124 = por %p122, %p123
      %p125 = scmp.ne.s32.totalorder %s116, %s117
      %p126 = scmp.eq.s32.totalorder %s22, 0
      %p127 = por %p125, %p126
      %p128 = scmp.ne.s32.totalorder %s116, %s117
      %p129 = scmp.eq.s32.totalorder %s23, 1
      %p130 = por %p128, %p129
      %p132 = scmp.ne.s32.totalorder %s117, %s131
      %p133 = scmp.eq.s32.totalorder %s23, 0
      %p134 = por %p132, %p133
      %s135 = ssub.s32 %s17, %s24
      %p136 = scmp.eq.s32.totalorder %s135, 0
      %s138 = sadd.s32 %s137, 1
      %s139 = scalar_select %p136, %s137, %s138
      %p142 = pneg %p136
      %p143 = scmp.eq.s32.totalorder %s17, 1
      %p144 = por %p142, %p143
      %p145 = scmp.ne.s32.totalorder %s137, %s140
      %p146 = scmp.eq.s32.totalorder %s17, 0
      %p147 = por %p145, %p146
      %p148 = scmp.ne.s32.totalorder %s137, %s140
      %p149 = scmp.eq.s32.totalorder %s22, 1
      %p150 = por %p148, %p149
      %p151 = scmp.ne.s32.totalorder %s140, %s141
      %p152 = scmp.eq.s32.totalorder %s22, 0
      %p153 = por %p151, %p152
      %p154 = scmp.ne.s32.totalorder %s140, %s141
      %p155 = scmp.eq.s32.totalorder %s23, 1
      %p156 = por %p154, %p155
      %p158 = scmp.ne.s32.totalorder %s141, %s157
      %p159 = scmp.eq.s32.totalorder %s23, 0
      %p160 = por %p158, %p159
      %p161 = scmp.le.s32.totalorder 1, %s17
      %p162 = scmp.lt.s32.totalorder %s17, 3
      %p163 = pnand %p161, %p162
      %p164 = pneg %p163
      // Predicated region
      $region9: #{tpu_custom_call.1} parent=5 // pred_check
        _
      $region10: #{tpu_custom_call.1} parent=5 // pred_check_branch
        %166 = sbr.rel (%p163) target = $region12
      $region11: #{tpu_custom_call.1} parent=5 // pred_region
        %s167 = ssub.s32 %s17, 1
        // Predicated region
        $region13: #{tpu_custom_call.1} parent=11 // pred_check
          %p168 = pneg %p64
        $region14: #{tpu_custom_call.1} parent=11 // pred_check_branch
          %170 = sbr.rel (%p168) target = $region16
        $region15: #{tpu_custom_call.1} parent=11 // pred_region
          _
        $region16: #{tpu_custom_call.1} parent=11 // pred_fallthru
          _
        // Predicated region
        $region17: #{tpu_custom_call.1} parent=11 // pred_check
          %p171 = pneg %p85
        $region18: #{tpu_custom_call.1} parent=11 // pred_check_branch
          %173 = sbr.rel (%p171) target = $region20
        $region19: #{tpu_custom_call.1} parent=11 // pred_region
          _
        $region20: #{tpu_custom_call.1} parent=11 // pred_fallthru
          _
        // Predicated region
        $region21: #{tpu_custom_call.1} parent=11 // pred_check
          %p174 = pneg %p106
        $region22: #{tpu_custom_call.1} parent=11 // pred_check_branch
          %176 = sbr.rel (%p174) target = $region24
        $region23: #{tpu_custom_call.1} parent=11 // pred_region
          _
        $region24: #{tpu_custom_call.1} parent=11 // pred_fallthru
          _
        // Predicated region
        $region25: #{tpu_custom_call.1} parent=11 // pred_check
          %p177 = pneg %p127
        $region26: #{tpu_custom_call.1} parent=11 // pred_check_branch
          %179 = sbr.rel (%p177) target = $region28
        $region27: #{tpu_custom_call.1} parent=11 // pred_region
          _
        $region28: #{tpu_custom_call.1} parent=11 // pred_fallthru
          _
      $region12: #{tpu_custom_call.1} parent=5 // pred_fallthru
        _
      %p180 = scmp.lt.s32.totalorder %s17, 2
      // Predicated region
      $region29: #{tpu_custom_call.1} parent=5 // pred_check
        %p181 = pneg %p180
      $region30: #{tpu_custom_call.1} parent=5 // pred_check_branch
        %183 = sbr.rel (%p181) target = $region32
      $region31: #{tpu_custom_call.1} parent=5 // pred_region
        // Predicated region
        $region33: #{tpu_custom_call.1} parent=31 // pred_check
          %p184 = pneg %p37
        $region34: #{tpu_custom_call.1} parent=31 // pred_check_branch
          %186 = sbr.rel (%p184) target = $region36
        $region35: #{tpu_custom_call.1} parent=31 // pred_region
          %s187 = sand.u32 %s27, 1
          %s188 = scalar_lea.sflag [#allocation3], %s187
          %s189 = sand.u32 %s27, 1
          %s190 = smul.addr %s189, 64
          %s191 = scalar_lea.vmem [#allocation2], %s190
          %193 = vsyncadd %s188, 0
          %s194 = smul.addr %s17, 8
          %s195 = smul.addr %s194, 8
          %s196 = scalar_lea.hbm %s0, %s195
          %s197 = sshll.u32 %s196, 4
          %s198 = int_to_ptr.hbm [resolvable:$true] %s197
          %s199 = sshll.u32 %s191, 4
          %s200 = int_to_ptr.vmem [resolvable:$true] %s199
          %205 = dma.hbm_to_vmem [thread:$0]  %s198, 1024, %s200, %s188, 256, 256, 16
        $region36: #{tpu_custom_call.1} parent=31 // pred_fallthru
          _
      $region32: #{tpu_custom_call.1} parent=5 // pred_fallthru
        _
      %p206 = scmp.le.s32.totalorder 1, %s17
      %p207 = scmp.lt.s32.totalorder %s17, 3
      %p208 = pnand %p206, %p207
      %p209 = pneg %p208
      // Predicated region
      $region37: #{tpu_custom_call.1} parent=5 // pred_check
        _
      $region38: #{tpu_custom_call.1} parent=5 // pred_check_branch
        %211 = sbr.rel (%p208) target = $region40
      $region39: #{tpu_custom_call.1} parent=5 // pred_region
        %s212 = ssub.s32 %s17, 1
        %s213 = sand.u32 %s30, 1
        %s214 = scalar_lea.sflag [#allocation3], %s213
        %s215 = sand.u32 %s30, 1
        %s216 = smul.addr %s215, 64
        %s217 = scalar_lea.vmem [#allocation2], %s216
        // Predicated region
        $region41: #{tpu_custom_call.1} parent=39 // pred_check
          %p218 = pneg %p43
        $region42: #{tpu_custom_call.1} parent=39 // pred_check_branch
          %220 = sbr.rel (%p218) target = $region44
        $region43: #{tpu_custom_call.1} parent=39 // pred_region
          %222 = dma.done %s214, 1024
        $region44: #{tpu_custom_call.1} parent=39 // pred_fallthru
          _
        %s223 = sand.u32 %s30, 1
        %s224 = scalar_lea.sflag [#allocation3], %s223
        %s225 = sand.u32 %s30, 1
        %s226 = smul.addr %s225, 64
        %s227 = scalar_lea.vmem [#allocation2], %s226
        %p228 = pneg %p43
        %p229 = pneg %p40
        %p230 = pneg %p64
        %p231 = pneg %p61
        %p232 = pneg %p85
        %p233 = pneg %p82
        %p234 = pneg %p106
        %p235 = pneg %p103
        %p236 = pneg %p127
        %p237 = pneg %p124
        %p238 = pneg %p153
        %p239 = pneg %p150
        %s240 = sand.u32 %s140, 1
        %s241 = scalar_lea.sflag [#allocation4], %s240
        %s242 = sand.u32 %s140, 1
        %s243 = smul.addr %s242, 64
        %s244 = scalar_lea.vmem [#allocation5], %s243
        %v245 = vld [vmem:[%s217] sm:$0xff]
        %v246 = vld [vmem:[%s217 + $0x8] sm:$0xff]
        %v247 = vld [vmem:[%s217 + $0x10] sm:$0xff]
        %v248 = vld [vmem:[%s217 + $0x18] sm:$0xff]
        %v249 = vld [vmem:[%s217 + $0x20] sm:$0xff]
        %v250 = vld [vmem:[%s217 + $0x28] sm:$0xff]
        %v251 = vld [vmem:[%s217 + $0x30] sm:$0xff]
        %v252 = vld [vmem:[%s217 + $0x38] sm:$0xff]
        %v253 = vadd.f32 %v245, %v246
        %254 = vadd.xlane.f32.xlu0 %v253
        %v255 = vpop.xlane.xlu0 %254
        %v256 = vadd.f32 %v247, %v248
        %257 = vadd.xlane.f32.xlu0 %v256
        %v258 = vpop.xlane.xlu0 %257
        %v259 = vadd.f32 %v249, %v250
        %260 = vadd.xlane.f32.xlu0 %v259
        %v261 = vpop.xlane.xlu0 %260
        %v262 = vadd.f32 %v251, %v252
        %263 = vadd.xlane.f32.xlu0 %v262
        %v264 = vpop.xlane.xlu0 %263
        %v265 = vmul.f32 %v255, 0.00390625
        %v266 = vmul.f32 %v258, 0.00390625
        %v267 = vmul.f32 %v261, 0.00390625
        %v268 = vmul.f32 %v264, 0.00390625
        %v269 = vld [vmem:[%s1] sm:$0xff]
        %v270 = vld [vmem:[%s1 + $0x8] sm:$0xff]
        %v271 = vld [vmem:[%s1 + $0x10] sm:$0xff]
        %v272 = vld [vmem:[%s1 + $0x18] sm:$0xff]
        %v273 = vld [vmem:[%s2] sm:$0x1]
        %v278 = vlaneseq
        %v279 = vand.u32 %v278, 127
        %v280 = vperm.slane %v265, %v279
        %v281 = vadd.s32 %v279, 4294967288
        %v282 = vperm.slane %v266, %v281
        %vm283 = vcmask 130112
        %v284 = vsel %vm283, %v282, %v280
        %v285 = vadd.s32 %v279, 4294967280
        %v286 = vperm.slane %v267, %v285
        %vm287 = vcmask 195712
        %v288 = vsel %vm287, %v286, %v284
        %v289 = vadd.s32 %v279, 4294967272
        %v290 = vperm.slane %v268, %v289
        %vm291 = vcmask 261312
        %v292 = vsel %vm291, %v290, %v288
        %vm293 = vcmask 261120
        %v294 = vsel %vm293, %v292, 0
        %296 = vmatpush.msra.mxu0 0.0
        %297 = vmatpush.msra.mxu0 0.0
        %298 = vmatpush.msra.mxu0 0.0
        %299 = vmatpush.msra.mxu0 0.0
        %300 = vmatpush.msra.mxu0 0.0
        %301 = vmatpush.msra.mxu0 0.0
        %302 = vmatpush.msra.mxu0 0.0
        %303 = vmatpush.msra.mxu0 0.0
        %304 = vmatpush.msra.mxu0 0.0
        %305 = vmatpush.msra.mxu0 0.0
        %306 = vmatpush.msra.mxu0 0.0
        %307 = vmatpush.msra.mxu0 0.0
        %308 = vmatpush.msra.mxu0 %v272
        %309 = vmatpush.msra.mxu0 %v271
        %310 = vmatpush.msra.mxu0 %v270
        %311 = vmatpush.msra.mxu0 %v269
        %312 = vmatmul.f32.gmra.mxu0 %v294
        %v313 = vpop.f32.mrf.mxu0
        %v314 = vadd.f32 %v273, %v313
        %315 = vdwg.mxu0
        %v316 = vmax.f32 %v314, 0.0
        %v317 = vld [vmem:[%s3] sm:$0xff]
        %v318 = vld [vmem:[%s4] sm:$0x1]
        %vm319 = vcmask 64512
        %v321 = vsel %vm319, %v316, 0
        %323 = vmatpush.msra.mxu0 0.0
        %324 = vmatpush.msra.mxu0 0.0
        %325 = vmatpush.msra.mxu0 0.0
        %326 = vmatpush.msra.mxu0 0.0
        %327 = vmatpush.msra.mxu0 0.0
        %328 = vmatpush.msra.mxu0 0.0
        %329 = vmatpush.msra.mxu0 0.0
        %330 = vmatpush.msra.mxu0 0.0
        %331 = vmatpush.msra.mxu0 0.0
        %332 = vmatpush.msra.mxu0 0.0
        %333 = vmatpush.msra.mxu0 0.0
        %334 = vmatpush.msra.mxu0 0.0
        %335 = vmatpush.msra.mxu0 0.0
        %336 = vmatpush.msra.mxu0 0.0
        %337 = vmatpush.msra.mxu0 0.0
        %338 = vmatpush.msra.mxu0 %v317
        %339 = vmatmul.f32.gmra.mxu0 %v321
        %v340 = vpop.f32.mrf.mxu0
        %v341 = vadd.f32 %v318, %v340
        %342 = vdwg.mxu0
        %v343 = vxor.u32 %v341, 2147483648
        %v344 = vmul.f32 %v343, 1.442695
        %v345 = vpow.pop %v344
        %v346 = vadd.f32 %v345, 1.0
        %v347 = vrcp.pop %v346
        %v348 = vmul.f32 %v346, %v347
        %v349 = vsub.f32 1.0, %v348
        %v350 = vmul.f32 %v347, %v349
        %v351 = vadd.f32 %v347, %v350
        %vm352 = vweird.f32 %v346
        %vm353 = vweird.f32 %v347
        %vm354 = vmor %vm352, %vm353
        %v355 = vsel %vm354, %v347, %v351
        %v356 = vand.u32 2147483647, %v346
        %vm357 = vcmp.eq.f32.partialorder %v356, 8.507059e+37
        %v358 = vand.u32 %v346, 2147483648
        %v359 = vor.u32 1.1754944e-38, %v358
        %v360 = vsel %vm357, %v359, %v355
        %v361 = vmul.f32 1.0, %v360
        %v362 = vperm.slane %v361, 0
        %v363 = vlaneseq
        %v364 = vshrl.u32 %v363, 7
        %366 = vset.pattern.permute.xlu0 %v364
        %367 = vperm.xlu0 %366, %v362
        %v368 = vpop.permute.xlu0 %367
        %v369 = vlaneseq
        %v370 = vshrl.u32 %v369, 7
        %v371 = vadd.s32 %v370, 8
        %372 = vset.pattern.permute.xlu0 %v371
        %373 = vperm.xlu0 %372, %v362
        %v374 = vpop.permute.xlu0 %373
        %v375 = vlaneseq
        %v376 = vshrl.u32 %v375, 7
        %v377 = vadd.s32 %v376, 16
        %378 = vset.pattern.permute.xlu0 %v377
        %379 = vperm.xlu0 %378, %v362
        %v380 = vpop.permute.xlu0 %379
        %v381 = vlaneseq
        %v382 = vshrl.u32 %v381, 7
        %v383 = vadd.s32 %v382, 24
        %384 = vset.pattern.permute.xlu0 %v383
        %385 = vperm.xlu0 %384, %v362
        %v386 = vpop.permute.xlu0 %385
        %v387 = vmul.f32 %v245, %v368
        %v388 = vmul.f32 %v246, %v368
        %v389 = vmul.f32 %v247, %v374
        %v390 = vmul.f32 %v248, %v374
        %v391 = vmul.f32 %v249, %v380
        %v392 = vmul.f32 %v250, %v380
        %v393 = vmul.f32 %v251, %v386
        %v394 = vmul.f32 %v252, %v386
        %395 = vst [vmem:[%s244] sm:$0xff] %v387
        %396 = vst [vmem:[%s244 + $0x8] sm:$0xff] %v388
        %397 = vst [vmem:[%s244 + $0x10] sm:$0xff] %v389
        %398 = vst [vmem:[%s244 + $0x18] sm:$0xff] %v390
        %399 = vst [vmem:[%s244 + $0x20] sm:$0xff] %v391
        %400 = vst [vmem:[%s244 + $0x28] sm:$0xff] %v392
        %401 = vst [vmem:[%s244 + $0x30] sm:$0xff] %v393
        %402 = vst [vmem:[%s244 + $0x38] sm:$0xff] %v394
        %s403 = sand.u32 %s140, 1
        %s404 = scalar_lea.sflag [#allocation4], %s403
        %s405 = sand.u32 %s140, 1
        %s406 = smul.addr %s405, 64
        %s407 = scalar_lea.vmem [#allocation5], %s406
        // Predicated region
        $region45: #{tpu_custom_call.1} parent=39 // pred_check
          %p408 = pneg %p150
        $region46: #{tpu_custom_call.1} parent=39 // pred_check_branch
          %410 = sbr.rel (%p408) target = $region48
        $region47: #{tpu_custom_call.1} parent=39 // pred_region
          %412 = vsyncadd %s404, 0
          %s413 = smul.addr %s22, 8
          %s414 = smul.addr %s413, 8
          %s415 = scalar_lea.hbm %s5, %s414
          %s416 = sshll.u32 %s407, 4
          %s417 = int_to_ptr.vmem [resolvable:$true] %s416
          %s418 = sshll.u32 %s415, 4
          %s419 = int_to_ptr.hbm [resolvable:$true] %s418
          %424 = dma.vmem_to_hbm [thread:$0]  %s417, 1024, %s419, %s404, 256, 256, 16
        $region48: #{tpu_custom_call.1} parent=39 // pred_fallthru
          _
      $region40: #{tpu_custom_call.1} parent=5 // pred_fallthru
        _
      %p425 = scmp.le.s32.totalorder 2, %s17
      // Predicated region
      $region49: #{tpu_custom_call.1} parent=5 // pred_check
        %p426 = pneg %p425
      $region50: #{tpu_custom_call.1} parent=5 // pred_check_branch
        %428 = sbr.rel (%p426) target = $region52
      $region51: #{tpu_custom_call.1} parent=5 // pred_region
        %s429 = ssub.s32 %s17, 2
        // Predicated region
        $region53: #{tpu_custom_call.1} parent=51 // pred_check
          %p430 = pneg %p156
        $region54: #{tpu_custom_call.1} parent=51 // pred_check_branch
          %432 = sbr.rel (%p430) target = $region56
        $region55: #{tpu_custom_call.1} parent=51 // pred_region
          %s433 = sand.u32 %s141, 1
          %s434 = scalar_lea.sflag [#allocation4], %s433
          %s435 = sand.u32 %s141, 1
          %s436 = smul.addr %s435, 64
          %s437 = scalar_lea.vmem [#allocation5], %s436
          %439 = dma.done %s434, 1024
        $region56: #{tpu_custom_call.1} parent=51 // pred_fallthru
          _
      $region52: #{tpu_custom_call.1} parent=5 // pred_fallthru
        _
    $region6: #{tpu_custom_call.1} parent=1 // loop_footer
      %s21 = sadd.s32 1, %s17
    $region7: #{tpu_custom_call.1} parent=1 // loop_footer_branch
      %16 = sbr.rel target = $region3
    $region8: #{tpu_custom_call.1} parent=1 // loop_exit
      _
    %440 = vsyncpa [#allocation3], 1
    %s441 = scalar_lea.sflag [#allocation3], 1
    %442 = vsyncpa %s441, 1
    %443 = vsyncpa [#allocation4], 1
    %s444 = scalar_lea.sflag [#allocation4], 1
    %445 = vsyncpa %s444, 1

</llo_original>
